<compile_context>
chip_gen: v7x
topology: tpu7x:2x2x1
jax: 0.10.0
libtpu: 0.0.40
codegen_flags: <defaults>
</compile_context>

<pallas_src>
import jax
import jax.numpy as jnp
from jax import lax
from jax.experimental import pallas as pl
from jax.experimental.pallas import tpu as pltpu

_LANE = 128            # analysis lane width
_APPLY_LANES = 512     # apply-pass lane width (wide, unmasked stores)
_APPLY_MAX_ROWS = 512  # apply-pass sublane rows per block (512*512*4B = 1 MiB/buf)

_POS_INF_BITS = 0x7F800000   # bit pattern of +inf (upper bound of positive-float bits)
_I32_MAX = 0x7FFFFFFF


def _cdiv(a, b):
    return (a + b - 1) // b


def _round_up(a, b):
    return _cdiv(a, b) * b


def _make_analysis_kernel(q_low, q_high):
    q_low = float(q_low)
    q_high = float(q_high)

    def kernel(x_ref, bits_ref, o_ref):
        x0 = x_ref[0]                      # (R, 128) f32, zero padded
        x1 = x_ref[1]
        x2 = x_ref[2]
        bits = bits_ref[...]               # (R, 128) int32 view of channel 0

        # Exact channel-equality check (padding is 0 == 0, neutral).
        neq = (jnp.sum((x0 != x1).astype(jnp.int32))
               + jnp.sum((x1 != x2).astype(jnp.int32)))

        pos = x0 > jnp.float32(0.0)        # padding (0.0) excluded
        n_i = jnp.sum(pos.astype(jnp.int32))
        n_f = n_i.astype(jnp.float32)

        # For positive floats the int32 bit pattern is monotone in the value.
        # Pre-mask once so the inner search loop is a single compare + count.
        mbits = jnp.where(pos, bits, jnp.int32(_I32_MAX))

        def ranks(q):
            # torch.quantile(values, q, interpolation="linear") rank math.
            p = jnp.maximum(jnp.float32(q) * (n_f - jnp.float32(1.0)),
                            jnp.float32(0.0))
            kf = p.astype(jnp.int32)                      # floor (p >= 0)
            frac = p - kf.astype(jnp.float32)
            kc = jnp.minimum(kf + 1, jnp.maximum(n_i - 1, 0))
            return kf + 1, kc + 1, frac                   # 1-based ranks + weight

        t0, t1, f_lo = ranks(q_low)
        t2, t3, f_hi = ranks(q_high)

        # One fused 32-iteration binary search on bit patterns for all 4 ranks.
        def body(_, carry):
            l0, h0, l1, h1, l2, h2, l3, h3 = carry

            def step(lo, hi, t):
                mid = lo + ((hi - lo) >> 1)
                cnt = jnp.sum((mbits <= mid).astype(jnp.int32))
                ge = cnt >= t
                return jnp.where(ge, lo, mid), jnp.where(ge, mid, hi)

            l0, h0 = step(l0, h0, t0)
            l1, h1 = step(l1, h1, t1)
            l2, h2 = step(l2, h2, t2)
            l3, h3 = step(l3, h3, t3)
            return l0, h0, l1, h1, l2, h2, l3, h3

        init = (jnp.int32(0), jnp.int32(_POS_INF_BITS)) * 4
        _, h0, _, h1, _, h2, _, h3 = lax.fori_loop(0, 32, body, init)

        def recover(hbits):
            # hbits is the exact bit pattern of the selected data value; recover
            # the float with a masked max (bit order == value order).
            return jnp.max(jnp.where(mbits <= hbits, x0, jnp.float32(0.0)))

        vf_lo, vc_lo = recover(h0), recover(h1)
        vf_hi, vc_hi = recover(h2), recover(h3)

        p_low = vf_lo + f_lo * (vc_lo - vf_lo)
        p_high = vf_hi + f_hi * (vc_hi - vf_hi)

        # Fold the data-dependent branch into the bounds: condition failed ->
        # (-inf, +inf) -> the apply pass is an exact pass-through.
        cond = jnp.logical_and(neq == 0, n_i >= 1)
        lo_eff = jnp.where(cond, p_low, jnp.float32(-jnp.inf))
        hi_eff = jnp.where(cond, p_high, jnp.float32(jnp.inf))

        lane = lax.broadcasted_iota(jnp.int32, (8, _LANE), 1)
        o_ref[...] = jnp.where(lane == 0, lo_eff, hi_eff)

    return kernel


def _clamp_kernel(b_ref, x_ref, o_ref):
    lo = b_ref[0, 0]                        # scalar bounds from the small VMEM tile
    hi = b_ref[0, 1]
    x = x_ref[...].astype(jnp.float32)
    o_ref[...] = jnp.minimum(jnp.maximum(x, lo), hi).astype(o_ref.dtype)


def intensity_clamp(x, percentile_low=1.0, percentile_high=99.0):
    """IntensityClamp.forward for x of shape [C, H, W]."""
    C, H, W = x.shape
    if C != 3:
        return x   # static shape branch of the torch module: no clamping

    # ---------------- pass 1: exact quantile bounds -----------------------------
    N = H * W
    rows_a = _round_up(max(_cdiv(N, _LANE), 8), 8)      # (8,128)-aligned rows
    xf = x.astype(jnp.float32).reshape(3, N)
    pad_a = rows_a * _LANE - N
    if pad_a:
        xf = jnp.pad(xf, ((0, 0), (0, pad_a)))          # zero pad: neutral
    x3 = xf.reshape(3, rows_a, _LANE)
    # int32 view of channel 0 (cheap XLA elementwise op, keeps the kernel free of
    # bit-reinterpret lowering concerns on both compiled and interpret paths).
    xbits = lax.bitcast_convert_type(x3[0], jnp.int32)

    analysis_bytes = 4 * rows_a * _LANE * 4             # 3 f32 channels + 1 i32 view
    vmem_limit = int(min(100 * 2**20, max(32 * 2**20, 4 * analysis_bytes)))

    bounds = pl.pallas_call(
        _make_analysis_kernel(percentile_low / 100.0, percentile_high / 100.0),
        out_shape=jax.ShapeDtypeStruct((8, _LANE), jnp.float32),
        grid=(1,),
        in_specs=[
            pl.BlockSpec((3, rows_a, _LANE), lambda i: (0, 0, 0)),
            pl.BlockSpec((rows_a, _LANE), lambda i: (0, 0)),
        ],
        out_specs=pl.BlockSpec((8, _LANE), lambda i: (0, 0)),
        compiler_params=pltpu.CompilerParams(
            dimension_semantics=("arbitrary",),
            vmem_limit_bytes=vmem_limit),
    )(x3, xbits)

    # ---------------- pass 2: tiled, pipelined, lane-dense clamp ----------------
    total = C * H * W
    rows = _cdiv(total, _APPLY_LANES)
    # Aim for >= 2 grid steps (v7x megacore) with <= 1 MiB blocks.
    block_rows = max(8, min(_APPLY_MAX_ROWS, _round_up(_cdiv(rows, 2), 8)))
    rows_p = _round_up(rows, block_rows)
    flat = x.reshape(-1)
    pad_b = rows_p * _APPLY_LANES - total
    if pad_b:
        flat = jnp.pad(flat, (0, pad_b))
    x2d = flat.reshape(rows_p, _APPLY_LANES)

    out2d = pl.pallas_call(
        _clamp_kernel,
        out_shape=jax.ShapeDtypeStruct((rows_p, _APPLY_LANES), x.dtype),
        grid=(rows_p // block_rows,),
        in_specs=[
            pl.BlockSpec((8, _LANE), lambda i: (0, 0)),                    # bounds
            pl.BlockSpec((block_rows, _APPLY_LANES), lambda i: (i, 0)),    # data
        ],
        out_specs=pl.BlockSpec((block_rows, _APPLY_LANES), lambda i: (i, 0)),
        compiler_params=pltpu.CompilerParams(
            dimension_semantics=("parallel",)),
    )(bounds, x2d)

    out = out2d.reshape(-1)
    if pad_b:
        out = out[:total]
    return out.reshape(C, H, W)


def _reference(x, percentile_low=1.0, percentile_high=99.0):
    """Pure-JAX emulation of IntensityClamp.forward (torch.quantile 'linear')."""
    if x.shape[0] != 3:
        return x
    xf = x.astype(jnp.float32)
    eq = jnp.logical_and(jnp.all(xf[0] == xf[1]), jnp.all(xf[1] == xf[2]))
    ch = xf[0].reshape(-1)
    pos = ch > 0.0
    n = jnp.sum(pos.astype(jnp.int32))
    s = jnp.sort(jnp.where(pos, ch, jnp.inf))     # positives ascending, then +inf

    def q_at(q):
        nf = n.astype(jnp.float32)
        p = jnp.maximum(q * (nf - 1.0), 0.0)
        kf = jnp.floor(p)
        frac = p - kf
        kf_i = kf.astype(jnp.int32)
        kc_i = jnp.minimum(kf_i + 1, jnp.maximum(n - 1, 0))
        vf = s[kf_i]
        vc = s[kc_i]
        return vf + frac * (vc - vf)

    p_low = q_at(percentile_low / 100.0)
    p_high = q_at(percentile_high / 100.0)
    do = jnp.logical_and(eq, n > 0)
    return jnp.where(do, jnp.clip(xf, p_low, p_high), xf).astype(x.dtype)


if __name__ == "__main__":
    key = jax.random.PRNGKey(0)
    k1, k2, k3, k4 = jax.random.split(key, 4)

    # Case 1: grayscale MRI slice replicated to 3 identical channels with zero
    # background (exercises the positive-value quantile path + padding).
    base = jax.random.uniform(k1, (16, 16), dtype=jnp.float32)
    keep = (jax.random.uniform(k2, (16, 16)) > 0.3).astype(jnp.float32)
    base = base * keep
    x_id = jnp.stack([base, base, base], axis=0)          # [3, 16, 16]

    out = jax.block_until_ready(intensity_clamp(x_id))
    ref = jax.block_until_ready(_reference(x_id))
    assert out.shape == x_id.shape and out.dtype == x_id.dtype
    err = float(jnp.max(jnp.abs(out - ref)))
    assert err < 1e-5, f"mismatch vs. reference: {err}"

    # Case 2: ragged spatial size (exercises lane + sublane padding paths).
    base2 = jax.random.uniform(k3, (20, 20), dtype=jnp.float32)
    base2 = base2 * (base2 > 0.25).astype(jnp.float32)
    x_id2 = jnp.stack([base2, base2, base2], axis=0)      # [3, 20, 20]
    out2 = jax.block_until_ready(intensity_clamp(x_id2))
    ref2 = jax.block_until_ready(_reference(x_id2))
    err2 = float(jnp.max(jnp.abs(out2 - ref2)))
    assert err2 < 1e-5, f"padded-case mismatch: {err2}"

    # Case 3: 3 non-identical channels -> exact pass-through.
    x_rgb = jax.random.uniform(k4, (3, 16, 16), dtype=jnp.float32)
    out3 = jax.block_until_ready(intensity_clamp(x_rgb))
    assert float(jnp.max(jnp.abs(out3 - x_rgb))) < 1e-7, "pass-through mismatch"

    print("KERNEL_OK")
</pallas_src>

<mosaic_0001>
module attributes {stable_mosaic.version = 11 : i64} {
  func.func @kernel(%arg0: i32, %arg1: memref<3x8x128xf32, #tpu.memory_space<vmem>>, %arg2: memref<8x128xi32, #tpu.memory_space<vmem>>, %arg3: memref<8x128xf32, #tpu.memory_space<vmem>>) attributes {dimension_semantics = [#tpu.dimension_semantics<arbitrary>], iteration_bounds = array<i64: 1>, scalar_prefetch = 0 : i64, scratch_operands = 0 : i64, tpu.core_type = #tpu.core_type<tc>, window_params = [{pipeline_mode = #tpu.pipeline_mode<synchronous>, transform_indices = @transform_0, window_bounds = array<i64: 3, 8, 128>}, {pipeline_mode = #tpu.pipeline_mode<synchronous>, transform_indices = @transform_1, window_bounds = array<i64: 8, 128>}, {pipeline_mode = #tpu.pipeline_mode<synchronous>, transform_indices = @transform_2, window_bounds = array<i64: 8, 128>}]} {
    %c0 = arith.constant 0 : index
    %c0_0 = arith.constant 0 : index
    %c0_1 = arith.constant 0 : index
    %0 = vector.load %arg1[%c0, %c0_0, %c0_1] : memref<3x8x128xf32, #tpu.memory_space<vmem>>, vector<1x8x128xf32>
    %1 = vector.shape_cast %0 : vector<1x8x128xf32> to vector<8x128xf32>
    %c1 = arith.constant 1 : index
    %c0_2 = arith.constant 0 : index
    %c0_3 = arith.constant 0 : index
    %2 = vector.load %arg1[%c1, %c0_2, %c0_3] : memref<3x8x128xf32, #tpu.memory_space<vmem>>, vector<1x8x128xf32>
    %3 = vector.shape_cast %2 : vector<1x8x128xf32> to vector<8x128xf32>
    %c2 = arith.constant 2 : index
    %c0_4 = arith.constant 0 : index
    %c0_5 = arith.constant 0 : index
    %4 = vector.load %arg1[%c2, %c0_4, %c0_5] : memref<3x8x128xf32, #tpu.memory_space<vmem>>, vector<1x8x128xf32>
    %5 = vector.shape_cast %4 : vector<1x8x128xf32> to vector<8x128xf32>
    %c0_6 = arith.constant 0 : index
    %c0_7 = arith.constant 0 : index
    %6 = vector.load %arg2[%c0_6, %c0_7] : memref<8x128xi32, #tpu.memory_space<vmem>>, vector<8x128xi32>
    %7 = arith.cmpf one, %1, %3 : vector<8x128xf32>
    %8 = arith.extui %7 : vector<8x128xi1> to vector<8x128xi32>
    %9 = vector.shape_cast %8 : vector<8x128xi32> to vector<1x8x128xi32>
    %cst = arith.constant dense<0> : vector<1xi32>
    %10 = vector.multi_reduction <add>, %9, %cst [1, 2] : vector<1x8x128xi32> to vector<1xi32>
    %11 = vector.shape_cast %10 : vector<1xi32> to vector<1x1x1xi32>
    %12 = vector.extract %11[0, 0, 0] : i32 from vector<1x1x1xi32>
    %13 = arith.cmpf one, %3, %5 : vector<8x128xf32>
    %14 = arith.extui %13 : vector<8x128xi1> to vector<8x128xi32>
    %15 = vector.shape_cast %14 : vector<8x128xi32> to vector<1x8x128xi32>
    %cst_8 = arith.constant dense<0> : vector<1xi32>
    %16 = vector.multi_reduction <add>, %15, %cst_8 [1, 2] : vector<1x8x128xi32> to vector<1xi32>
    %17 = vector.shape_cast %16 : vector<1xi32> to vector<1x1x1xi32>
    %18 = vector.extract %17[0, 0, 0] : i32 from vector<1x1x1xi32>
    %19 = arith.addi %12, %18 : i32
    %cst_9 = arith.constant 0.000000e+00 : f32
    %20 = vector.broadcast %cst_9 : f32 to vector<8x128xf32>
    %21 = arith.cmpf ogt, %1, %20 : vector<8x128xf32>
    %22 = arith.extui %21 : vector<8x128xi1> to vector<8x128xi32>
    %23 = vector.shape_cast %22 : vector<8x128xi32> to vector<1x8x128xi32>
    %cst_10 = arith.constant dense<0> : vector<1xi32>
    %24 = vector.multi_reduction <add>, %23, %cst_10 [1, 2] : vector<1x8x128xi32> to vector<1xi32>
    %25 = vector.shape_cast %24 : vector<1xi32> to vector<1x1x1xi32>
    %26 = vector.extract %25[0, 0, 0] : i32 from vector<1x1x1xi32>
    %27 = arith.sitofp %26 : i32 to f32
    %c2147483647_i32 = arith.constant 2147483647 : i32
    %28 = vector.broadcast %c2147483647_i32 : i32 to vector<8x128xi32>
    %29 = arith.select %21, %6, %28 : vector<8x128xi1>, vector<8x128xi32>
    %cst_11 = arith.constant 1.000000e+00 : f32
    %30 = arith.subf %27, %cst_11 : f32
    %cst_12 = arith.constant 0.00999999977 : f32
    %31 = arith.mulf %cst_12, %30 : f32
    %cst_13 = arith.constant 0.000000e+00 : f32
    %32 = arith.maximumf %31, %cst_13 : f32
    %33 = arith.fptosi %32 : f32 to i32
    %34 = arith.sitofp %33 : i32 to f32
    %35 = arith.subf %32, %34 : f32
    %c1_i32 = arith.constant 1 : i32
    %36 = arith.addi %33, %c1_i32 : i32
    %c1_i32_14 = arith.constant 1 : i32
    %37 = arith.subi %26, %c1_i32_14 : i32
    %c0_i32 = arith.constant 0 : i32
    %38 = arith.maxsi %37, %c0_i32 : i32
    %39 = arith.minsi %36, %38 : i32
    %c1_i32_15 = arith.constant 1 : i32
    %40 = arith.addi %33, %c1_i32_15 : i32
    %c1_i32_16 = arith.constant 1 : i32
    %41 = arith.addi %39, %c1_i32_16 : i32
    %cst_17 = arith.constant 1.000000e+00 : f32
    %42 = arith.subf %27, %cst_17 : f32
    %cst_18 = arith.constant 9.900000e-01 : f32
    %43 = arith.mulf %cst_18, %42 : f32
    %cst_19 = arith.constant 0.000000e+00 : f32
    %44 = arith.maximumf %43, %cst_19 : f32
    %45 = arith.fptosi %44 : f32 to i32
    %46 = arith.sitofp %45 : i32 to f32
    %47 = arith.subf %44, %46 : f32
    %c1_i32_20 = arith.constant 1 : i32
    %48 = arith.addi %45, %c1_i32_20 : i32
    %c1_i32_21 = arith.constant 1 : i32
    %49 = arith.subi %26, %c1_i32_21 : i32
    %c0_i32_22 = arith.constant 0 : i32
    %50 = arith.maxsi %49, %c0_i32_22 : i32
    %51 = arith.minsi %48, %50 : i32
    %c1_i32_23 = arith.constant 1 : i32
    %52 = arith.addi %45, %c1_i32_23 : i32
    %c1_i32_24 = arith.constant 1 : i32
    %53 = arith.addi %51, %c1_i32_24 : i32
    %c0_i32_25 = arith.constant 0 : i32
    %c2139095040_i32 = arith.constant 2139095040 : i32
    %c0_i32_26 = arith.constant 0 : i32
    %c2139095040_i32_27 = arith.constant 2139095040 : i32
    %c0_i32_28 = arith.constant 0 : i32
    %c2139095040_i32_29 = arith.constant 2139095040 : i32
    %c0_i32_30 = arith.constant 0 : i32
    %c2139095040_i32_31 = arith.constant 2139095040 : i32
    %c0_i32_32 = arith.constant 0 : i32
    %c32_i32 = arith.constant 32 : i32
    %54 = arith.addi %c0_i32_32, %c32_i32 : i32
    %c1_i32_33 = arith.constant 1 : i32
    %55:8 = scf.for %arg4 = %c0_i32_32 to %54 step %c1_i32_33 iter_args(%arg5 = %c0_i32_25, %arg6 = %c2139095040_i32, %arg7 = %c0_i32_26, %arg8 = %c2139095040_i32_27, %arg9 = %c0_i32_28, %arg10 = %c2139095040_i32_29, %arg11 = %c0_i32_30, %arg12 = %c2139095040_i32_31) -> (i32, i32, i32, i32, i32, i32, i32, i32)  : i32 {
      %106 = arith.subi %arg6, %arg5 : i32
      %c1_i32_49 = arith.constant 1 : i32
      %107 = arith.shrsi %106, %c1_i32_49 : i32
      %108 = arith.addi %arg5, %107 : i32
      %109 = vector.broadcast %108 : i32 to vector<8x128xi32>
      %110 = arith.cmpi sle, %29, %109 : vector<8x128xi32>
      %111 = arith.extui %110 : vector<8x128xi1> to vector<8x128xi32>
      %112 = vector.shape_cast %111 : vector<8x128xi32> to vector<1x8x128xi32>
      %cst_50 = arith.constant dense<0> : vector<1xi32>
      %113 = vector.multi_reduction <add>, %112, %cst_50 [1, 2] : vector<1x8x128xi32> to vector<1xi32>
      %114 = vector.shape_cast %113 : vector<1xi32> to vector<1x1x1xi32>
      %115 = vector.extract %114[0, 0, 0] : i32 from vector<1x1x1xi32>
      %116 = arith.cmpi sge, %115, %40 : i32
      %117 = arith.select %116, %arg5, %108 : i32
      %118 = arith.select %116, %108, %arg6 : i32
      %119 = arith.subi %arg8, %arg7 : i32
      %c1_i32_51 = arith.constant 1 : i32
      %120 = arith.shrsi %119, %c1_i32_51 : i32
      %121 = arith.addi %arg7, %120 : i32
      %122 = vector.broadcast %121 : i32 to vector<8x128xi32>
      %123 = arith.cmpi sle, %29, %122 : vector<8x128xi32>
      %124 = arith.extui %123 : vector<8x128xi1> to vector<8x128xi32>
      %125 = vector.shape_cast %124 : vector<8x128xi32> to vector<1x8x128xi32>
      %cst_52 = arith.constant dense<0> : vector<1xi32>
      %126 = vector.multi_reduction <add>, %125, %cst_52 [1, 2] : vector<1x8x128xi32> to vector<1xi32>
      %127 = vector.shape_cast %126 : vector<1xi32> to vector<1x1x1xi32>
      %128 = vector.extract %127[0, 0, 0] : i32 from vector<1x1x1xi32>
      %129 = arith.cmpi sge, %128, %41 : i32
      %130 = arith.select %129, %arg7, %121 : i32
      %131 = arith.select %129, %121, %arg8 : i32
      %132 = arith.subi %arg10, %arg9 : i32
      %c1_i32_53 = arith.constant 1 : i32
      %133 = arith.shrsi %132, %c1_i32_53 : i32
      %134 = arith.addi %arg9, %133 : i32
      %135 = vector.broadcast %134 : i32 to vector<8x128xi32>
      %136 = arith.cmpi sle, %29, %135 : vector<8x128xi32>
      %137 = arith.extui %136 : vector<8x128xi1> to vector<8x128xi32>
      %138 = vector.shape_cast %137 : vector<8x128xi32> to vector<1x8x128xi32>
      %cst_54 = arith.constant dense<0> : vector<1xi32>
      %139 = vector.multi_reduction <add>, %138, %cst_54 [1, 2] : vector<1x8x128xi32> to vector<1xi32>
      %140 = vector.shape_cast %139 : vector<1xi32> to vector<1x1x1xi32>
      %141 = vector.extract %140[0, 0, 0] : i32 from vector<1x1x1xi32>
      %142 = arith.cmpi sge, %141, %52 : i32
      %143 = arith.select %142, %arg9, %134 : i32
      %144 = arith.select %142, %134, %arg10 : i32
      %145 = arith.subi %arg12, %arg11 : i32
      %c1_i32_55 = arith.constant 1 : i32
      %146 = arith.shrsi %145, %c1_i32_55 : i32
      %147 = arith.addi %arg11, %146 : i32
      %148 = vector.broadcast %147 : i32 to vector<8x128xi32>
      %149 = arith.cmpi sle, %29, %148 : vector<8x128xi32>
      %150 = arith.extui %149 : vector<8x128xi1> to vector<8x128xi32>
      %151 = vector.shape_cast %150 : vector<8x128xi32> to vector<1x8x128xi32>
      %cst_56 = arith.constant dense<0> : vector<1xi32>
      %152 = vector.multi_reduction <add>, %151, %cst_56 [1, 2] : vector<1x8x128xi32> to vector<1xi32>
      %153 = vector.shape_cast %152 : vector<1xi32> to vector<1x1x1xi32>
      %154 = vector.extract %153[0, 0, 0] : i32 from vector<1x1x1xi32>
      %155 = arith.cmpi sge, %154, %53 : i32
      %156 = arith.select %155, %arg11, %147 : i32
      %157 = arith.select %155, %147, %arg12 : i32
      scf.yield %117, %118, %130, %131, %143, %144, %156, %157 : i32, i32, i32, i32, i32, i32, i32, i32
    }
    %56 = vector.broadcast %55#1 : i32 to vector<8x128xi32>
    %57 = arith.cmpi sle, %29, %56 : vector<8x128xi32>
    %cst_34 = arith.constant 0.000000e+00 : f32
    %58 = vector.broadcast %cst_34 : f32 to vector<8x128xf32>
    %59 = arith.select %57, %1, %58 : vector<8x128xi1>, vector<8x128xf32>
    %60 = vector.shape_cast %59 : vector<8x128xf32> to vector<1x8x128xf32>
    %cst_35 = arith.constant dense<0xFF800000> : vector<1xf32>
    %61 = vector.multi_reduction <maximumf>, %60, %cst_35 [1, 2] : vector<1x8x128xf32> to vector<1xf32>
    %62 = vector.shape_cast %61 : vector<1xf32> to vector<1x1x1xf32>
    %63 = vector.extract %62[0, 0, 0] : f32 from vector<1x1x1xf32>
    %64 = vector.broadcast %55#3 : i32 to vector<8x128xi32>
    %65 = arith.cmpi sle, %29, %64 : vector<8x128xi32>
    %cst_36 = arith.constant 0.000000e+00 : f32
    %66 = vector.broadcast %cst_36 : f32 to vector<8x128xf32>
    %67 = arith.select %65, %1, %66 : vector<8x128xi1>, vector<8x128xf32>
    %68 = vector.shape_cast %67 : vector<8x128xf32> to vector<1x8x128xf32>
    %cst_37 = arith.constant dense<0xFF800000> : vector<1xf32>
    %69 = vector.multi_reduction <maximumf>, %68, %cst_37 [1, 2] : vector<1x8x128xf32> to vector<1xf32>
    %70 = vector.shape_cast %69 : vector<1xf32> to vector<1x1x1xf32>
    %71 = vector.extract %70[0, 0, 0] : f32 from vector<1x1x1xf32>
    %72 = vector.broadcast %55#5 : i32 to vector<8x128xi32>
    %73 = arith.cmpi sle, %29, %72 : vector<8x128xi32>
    %cst_38 = arith.constant 0.000000e+00 : f32
    %74 = vector.broadcast %cst_38 : f32 to vector<8x128xf32>
    %75 = arith.select %73, %1, %74 : vector<8x128xi1>, vector<8x128xf32>
    %76 = vector.shape_cast %75 : vector<8x128xf32> to vector<1x8x128xf32>
    %cst_39 = arith.constant dense<0xFF800000> : vector<1xf32>
    %77 = vector.multi_reduction <maximumf>, %76, %cst_39 [1, 2] : vector<1x8x128xf32> to vector<1xf32>
    %78 = vector.shape_cast %77 : vector<1xf32> to vector<1x1x1xf32>
    %79 = vector.extract %78[0, 0, 0] : f32 from vector<1x1x1xf32>
    %80 = vector.broadcast %55#7 : i32 to vector<8x128xi32>
    %81 = arith.cmpi sle, %29, %80 : vector<8x128xi32>
    %cst_40 = arith.constant 0.000000e+00 : f32
    %82 = vector.broadcast %cst_40 : f32 to vector<8x128xf32>
    %83 = arith.select %81, %1, %82 : vector<8x128xi1>, vector<8x128xf32>
    %84 = vector.shape_cast %83 : vector<8x128xf32> to vector<1x8x128xf32>
    %cst_41 = arith.constant dense<0xFF800000> : vector<1xf32>
    %85 = vector.multi_reduction <maximumf>, %84, %cst_41 [1, 2] : vector<1x8x128xf32> to vector<1xf32>
    %86 = vector.shape_cast %85 : vector<1xf32> to vector<1x1x1xf32>
    %87 = vector.extract %86[0, 0, 0] : f32 from vector<1x1x1xf32>
    %88 = arith.subf %71, %63 : f32
    %89 = arith.mulf %35, %88 : f32
    %90 = arith.addf %63, %89 : f32
    %91 = arith.subf %87, %79 : f32
    %92 = arith.mulf %47, %91 : f32
    %93 = arith.addf %79, %92 : f32
    %c0_i32_42 = arith.constant 0 : i32
    %94 = arith.cmpi eq, %19, %c0_i32_42 : i32
    %c1_i32_43 = arith.constant 1 : i32
    %95 = arith.cmpi sge, %26, %c1_i32_43 : i32
    %96 = arith.andi %94, %95 : i1
    %cst_44 = arith.constant 0xFF800000 : f32
    %97 = arith.select %96, %90, %cst_44 : f32
    %cst_45 = arith.constant 0x7F800000 : f32
    %98 = arith.select %96, %93, %cst_45 : f32
    %99 = tpu.iota {dimensions = array<i32: 1>} : vector<8x128xi32>
    %c0_i32_46 = arith.constant 0 : i32
    %100 = vector.broadcast %c0_i32_46 : i32 to vector<8x128xi32>
    %101 = arith.cmpi eq, %99, %100 : vector<8x128xi32>
    %102 = vector.broadcast %97 : f32 to vector<8x128xf32>
    %103 = vector.broadcast %98 : f32 to vector<8x128xf32>
    %104 = arith.select %101, %102, %103 : vector<8x128xi1>, vector<8x128xf32>
    %c0_47 = arith.constant 0 : index
    %c0_48 = arith.constant 0 : index
    %105 = vector.load %arg3[%c0_47, %c0_48] : memref<8x128xf32, #tpu.memory_space<vmem>>, vector<8x128xf32>
    tpu.vector_store %arg3[%c0_47, %c0_48], %104 {strides = array<i32>} : memref<8x128xf32, #tpu.memory_space<vmem>>, vector<8x128xf32>,
    return
  }
  func.func @transform_0(%arg0: i32) -> (i32, i32, i32) {
    %c0_i32 = arith.constant 0 : i32
    %c0_i32_0 = arith.constant 0 : i32
    %c0_i32_1 = arith.constant 0 : i32
    %c0_i32_2 = arith.constant 0 : i32
    return %c0_i32, %c0_i32_0, %c0_i32_1 : i32, i32, i32
  }
  func.func @transform_1(%arg0: i32) -> (i32, i32) {
    %c0_i32 = arith.constant 0 : i32
    %c0_i32_0 = arith.constant 0 : i32
    %c0_i32_1 = arith.constant 0 : i32
    return %c0_i32, %c0_i32_0 : i32, i32
  }
  func.func @transform_2(%arg0: i32) -> (i32, i32) {
    %c0_i32 = arith.constant 0 : i32
    %c0_i32_0 = arith.constant 0 : i32
    %c0_i32_1 = arith.constant 0 : i32
    return %c0_i32, %c0_i32_0 : i32, i32
  }
}

</mosaic_0001>

<llo_original>
// kernel: tpu_custom_call.1
$region0: #{tpu_custom_call.1}
  #allocation0 [shape = 'u32[]', space=smem, size = 0x4, offset = 0x4, fixed_abs, tag = 'smem constant byte address 0x4 - core index']
  #allocation1 [shape = 'u32[144,128]{1,0:T(1,128)}', space=vmem, size = 0x12000, scoped, tag = 'internal scratch']
  %s0 = inlined_call_operand.hbm [shape: f32[3,8,128], index: 0, kind: input, shape index: {}]
  %s1 = inlined_call_operand.hbm [shape: s32[8,128], index: 1, kind: input, shape index: {}]
  %s2 = inlined_call_operand.hbm [shape: f32[8,128], index: 2, kind: output, shape index: {}]
  %s3 = sld [smem:[#allocation0]]
  $region33: #{tpu_custom_call.1} parent=0
    _
  %s5 = ssub.s32 1, %s3
  %s6 = scalar_select 0, %s5, %s3
  $region1: #{tpu_custom_call.1} parent=0
    #allocation2 [shape = 'u8[12288]{0}', space=vmem, size = 0x3000, scoped, tag = 'input window, operand 0, single buffered']
    #allocation3 [shape = 's32[1]{0}', space=sflag, size = 0x4, scoped, tag = 'scoped memory for tpu_custom_call.1']
    #allocation4 [shape = 's32[1]{0}', space=sflag, size = 0x4, scoped, tag = 'scoped memory for tpu_custom_call.1']
    #allocation5 [shape = 'u8[4096]{0}', space=vmem, size = 0x1000, scoped, tag = 'input window, operand 1, single buffered']
    #allocation6 [shape = 's32[1]{0}', space=sflag, size = 0x4, scoped, tag = 'scoped memory for tpu_custom_call.1']
    #allocation7 [shape = 'u8[4096]{0}', space=vmem, size = 0x1000, scoped, tag = 'output window, operand 0, single buffered']
    %7 = vsyncpa [#allocation3], 0
    %8 = vsyncpa [#allocation6], 0
    %9 = vsyncpa [#allocation4], 0
    // Predicated region
    $region2: #{tpu_custom_call.1} parent=1 // pred_check
      _
    $region3: #{tpu_custom_call.1} parent=1 // pred_check_branch
      %11 = sbr.rel (0) target = $region5
    $region4: #{tpu_custom_call.1} parent=1 // pred_region
      %s13 = ssub.s32 384, 384
      %14 = vsyncadd [#allocation3], %s13
      %s15 = sshll.u32 [#allocation2], 4
      %s16 = int_to_ptr.vmem [resolvable:$true] %s15
      %21 = dma.hbm_to_vmem [thread:$0]  %s0, 384, %s16, [#allocation3], 128, 128, 8
    $region5: #{tpu_custom_call.1} parent=1 // pred_fallthru
      _
    // Predicated region
    $region6: #{tpu_custom_call.1} parent=1 // pred_check
      _
    $region7: #{tpu_custom_call.1} parent=1 // pred_check_branch
      %23 = sbr.rel (0) target = $region9
    $region8: #{tpu_custom_call.1} parent=1 // pred_region
      %s25 = ssub.s32 128, 128
      %26 = vsyncadd [#allocation6], %s25
      %s28 = sshll.u32 [#allocation5], 4
      %s29 = int_to_ptr.vmem [resolvable:$true] %s28
      %31 = dma.hbm_to_vmem [thread:$0]  %s1, 128, %s29, [#allocation6]
    $region9: #{tpu_custom_call.1} parent=1 // pred_fallthru
      _
    // Predicated region
    $region10: #{tpu_custom_call.1} parent=1 // pred_check
      _
    $region11: #{tpu_custom_call.1} parent=1 // pred_check_branch
      %33 = sbr.rel (0) target = $region13
    $region12: #{tpu_custom_call.1} parent=1 // pred_region
      %34 = dma.done [#allocation3], 384
    $region13: #{tpu_custom_call.1} parent=1 // pred_fallthru
      _
    // Predicated region
    $region14: #{tpu_custom_call.1} parent=1 // pred_check
      _
    $region15: #{tpu_custom_call.1} parent=1 // pred_check_branch
      %36 = sbr.rel (0) target = $region17
    $region16: #{tpu_custom_call.1} parent=1 // pred_region
      %37 = dma.done [#allocation6], 128
    $region17: #{tpu_custom_call.1} parent=1 // pred_fallthru
      _
    %v38 = vld [vmem:[#allocation2] sm:$0xff]
    %s39 = scalar_lea.vmem [#allocation2], 8
    %v40 = vld [vmem:[%s39] sm:$0xff]
    %s41 = scalar_lea.vmem [#allocation2], 16
    %v42 = vld [vmem:[%s41] sm:$0xff]
    %v43 = vld [vmem:[#allocation5] sm:$0xff]
    %vm44 = vcmp.ne.f32.partialorder %v38, %v40
    %v45 = vsel %vm44, 1, 0
    %v46 = vand.u32 %v45, 65535
    %v47 = vshrl.u32 %v45, 16
    %v48 = vcvt.s32.f32 %v46
    %v49 = vcvt.s32.f32 %v47
    %50 = vadd.xlane.f32.xlu0 %v48
    %v51 = vpop.xlane.xlu0 %50
    %52 = vadd.xlane.f32.xlu0 %v49
    %v53 = vpop.xlane.xlu0 %52
    %v54 = vcvt.f32.s32 %v51
    %v55 = vcvt.f32.s32 %v53
    %v56 = vshll.u32 %v55, 16
    %v57 = vadd.s32 %v56, %v54
    %v58 = vrot.slane %v57, 4
    %v59 = vadd.s32 %v57, %v58
    %v60 = vrot.slane %v59, 2
    %v61 = vadd.s32 %v59, %v60
    %v62 = vrot.slane %v61, 1
    %v63 = vadd.s32 %v61, %v62
    %s64 = vtos %v63
    %vm65 = vcmp.ne.f32.partialorder %v40, %v42
    %v66 = vsel %vm65, 1, 0
    %v67 = vand.u32 %v66, 65535
    %v68 = vshrl.u32 %v66, 16
    %v69 = vcvt.s32.f32 %v67
    %v70 = vcvt.s32.f32 %v68
    %71 = vadd.xlane.f32.xlu0 %v69
    %v72 = vpop.xlane.xlu0 %71
    %73 = vadd.xlane.f32.xlu0 %v70
    %v74 = vpop.xlane.xlu0 %73
    %v75 = vcvt.f32.s32 %v72
    %v76 = vcvt.f32.s32 %v74
    %v77 = vshll.u32 %v76, 16
    %v78 = vadd.s32 %v77, %v75
    %v79 = vrot.slane %v78, 4
    %v80 = vadd.s32 %v78, %v79
    %v81 = vrot.slane %v80, 2
    %v82 = vadd.s32 %v80, %v81
    %v83 = vrot.slane %v82, 1
    %v84 = vadd.s32 %v82, %v83
    %s85 = vtos %v84
    %s86 = sadd.s32 %s64, %s85
    %vm87 = vcmp.gt.f32.partialorder %v38, 0.0
    %v88 = vsel %vm87, 1, 0
    %v89 = vand.u32 %v88, 65535
    %v90 = vshrl.u32 %v88, 16
    %v91 = vcvt.s32.f32 %v89
    %v92 = vcvt.s32.f32 %v90
    %93 = vadd.xlane.f32.xlu0 %v91
    %v94 = vpop.xlane.xlu0 %93
    %95 = vadd.xlane.f32.xlu0 %v92
    %v96 = vpop.xlane.xlu0 %95
    %v97 = vcvt.f32.s32 %v94
    %v98 = vcvt.f32.s32 %v96
    %v99 = vshll.u32 %v98, 16
    %v100 = vadd.s32 %v99, %v97
    %v101 = vrot.slane %v100, 4
    %v102 = vadd.s32 %v100, %v101
    %v103 = vrot.slane %v102, 2
    %v104 = vadd.s32 %v102, %v103
    %v105 = vrot.slane %v104, 1
    %v106 = vadd.s32 %v104, %v105
    %s107 = vtos %v106
    %s108 = scvt.s32.f32 %s107
    %v109 = vsel %vm87, %v43, 2147483647
    %s110 = ssub.f32 %s108, 1.0
    %s111 = smul.f32 %s110, 0.01
    %s112 = smax.f32 %s111, 0.0
    %s113 = scvt.f32.s32.to.zero.pseudo %s112
    %s114 = scvt.s32.f32 %s113
    %s115 = ssub.f32 %s112, %s114
    %s116 = sadd.s32 %s113, 1
    %s117 = ssub.s32 %s107, 1
    %p118 = scmp.gt.s32.totalorder %s117, 0
    %s119 = scalar_select %p118, %s117, 0
    %p120 = scmp.lt.s32.totalorder %s116, %s119
    %s121 = scalar_select %p120, %s116, %s119
    %s122 = sadd.s32 %s121, 1
    %s123 = smul.f32 %s110, 0.99
    %s124 = smax.f32 %s123, 0.0
    %s125 = scvt.f32.s32.to.zero.pseudo %s124
    %s126 = scvt.s32.f32 %s125
    %s127 = ssub.f32 %s124, %s126
    %s128 = sadd.s32 %s125, 1
    %p129 = scmp.lt.s32.totalorder %s128, %s119
    %s130 = scalar_select %p129, %s128, %s119
    %s131 = sadd.s32 %s130, 1
    loop: start=0, step=1, limit=32
    $region18: #{tpu_custom_call.1} parent=1 // loop_pre_header
      _
    $region19: #{tpu_custom_call.1} parent=1 // loop_header
      %s133 = sphi 0, %s137
      %p134 = scmp.ge.s32.totalorder %s133, 32
      %s138 = sphi 0, %s172
      %s139 = sphi 2139095040, %s173
      %s140 = sphi 0, %s200
      %s141 = sphi 2139095040, %s201
      %s142 = sphi 0, %s228
      %s143 = sphi 2139095040, %s229
      %s144 = sphi 0, %s256
      %s145 = sphi 2139095040, %s257
    $region20: #{tpu_custom_call.1} parent=1 // loop_header_branch
      %136 = sbr.rel (%p134) target = $region24
    $region21: #{tpu_custom_call.1} parent=1 // loop_body
      %s146 = ssub.s32 %s139, %s138
      %s147 = sshra.s32 %s146, 1
      %s148 = sadd.s32 %s138, %s147
      %v149 = vstv %s148
      %vm150 = vcmp.le.s32.totalorder %v109, %v149
      %v151 = vsel %vm150, 1, 0
      %v152 = vand.u32 %v151, 65535
      %v153 = vshrl.u32 %v151, 16
      %v154 = vcvt.s32.f32 %v152
      %v155 = vcvt.s32.f32 %v153
      %156 = vadd.xlane.f32.xlu0 %v154
      %v157 = vpop.xlane.xlu0 %156
      %158 = vadd.xlane.f32.xlu0 %v155
      %v159 = vpop.xlane.xlu0 %158
      %v160 = vcvt.f32.s32 %v157
      %v161 = vcvt.f32.s32 %v159
      %v162 = vshll.u32 %v161, 16
      %v163 = vadd.s32 %v162, %v160
      %v164 = vrot.slane %v163, 4
      %v165 = vadd.s32 %v163, %v164
      %v166 = vrot.slane %v165, 2
      %v167 = vadd.s32 %v165, %v166
      %v168 = vrot.slane %v167, 1
      %v169 = vadd.s32 %v167, %v168
      %s170 = vtos %v169
      %p171 = scmp.ge.s32.totalorder %s170, %s116
      %s172 = scalar_select %p171, %s138, %s148
      %s173 = scalar_select %p171, %s148, %s139
      %s174 = ssub.s32 %s141, %s140
      %s175 = sshra.s32 %s174, 1
      %s176 = sadd.s32 %s140, %s175
      %v177 = vstv %s176
      %vm178 = vcmp.le.s32.totalorder %v109, %v177
      %v179 = vsel %vm178, 1, 0
      %v180 = vand.u32 %v179, 65535
      %v181 = vshrl.u32 %v179, 16
      %v182 = vcvt.s32.f32 %v180
      %v183 = vcvt.s32.f32 %v181
      %184 = vadd.xlane.f32.xlu0 %v182
      %v185 = vpop.xlane.xlu0 %184
      %186 = vadd.xlane.f32.xlu0 %v183
      %v187 = vpop.xlane.xlu0 %186
      %v188 = vcvt.f32.s32 %v185
      %v189 = vcvt.f32.s32 %v187
      %v190 = vshll.u32 %v189, 16
      %v191 = vadd.s32 %v190, %v188
      %v192 = vrot.slane %v191, 4
      %v193 = vadd.s32 %v191, %v192
      %v194 = vrot.slane %v193, 2
      %v195 = vadd.s32 %v193, %v194
      %v196 = vrot.slane %v195, 1
      %v197 = vadd.s32 %v195, %v196
      %s198 = vtos %v197
      %p199 = scmp.ge.s32.totalorder %s198, %s122
      %s200 = scalar_select %p199, %s140, %s176
      %s201 = scalar_select %p199, %s176, %s141
      %s202 = ssub.s32 %s143, %s142
      %s203 = sshra.s32 %s202, 1
      %s204 = sadd.s32 %s142, %s203
      %v205 = vstv %s204
      %vm206 = vcmp.le.s32.totalorder %v109, %v205
      %v207 = vsel %vm206, 1, 0
      %v208 = vand.u32 %v207, 65535
      %v209 = vshrl.u32 %v207, 16
      %v210 = vcvt.s32.f32 %v208
      %v211 = vcvt.s32.f32 %v209
      %212 = vadd.xlane.f32.xlu0 %v210
      %v213 = vpop.xlane.xlu0 %212
      %214 = vadd.xlane.f32.xlu0 %v211
      %v215 = vpop.xlane.xlu0 %214
      %v216 = vcvt.f32.s32 %v213
      %v217 = vcvt.f32.s32 %v215
      %v218 = vshll.u32 %v217, 16
      %v219 = vadd.s32 %v218, %v216
      %v220 = vrot.slane %v219, 4
      %v221 = vadd.s32 %v219, %v220
      %v222 = vrot.slane %v221, 2
      %v223 = vadd.s32 %v221, %v222
      %v224 = vrot.slane %v223, 1
      %v225 = vadd.s32 %v223, %v224
      %s226 = vtos %v225
      %p227 = scmp.ge.s32.totalorder %s226, %s128
      %s228 = scalar_select %p227, %s142, %s204
      %s229 = scalar_select %p227, %s204, %s143
      %s230 = ssub.s32 %s145, %s144
      %s231 = sshra.s32 %s230, 1
      %s232 = sadd.s32 %s144, %s231
      %v233 = vstv %s232
      %vm234 = vcmp.le.s32.totalorder %v109, %v233
      %v235 = vsel %vm234, 1, 0
      %v236 = vand.u32 %v235, 65535
      %v237 = vshrl.u32 %v235, 16
      %v238 = vcvt.s32.f32 %v236
      %v239 = vcvt.s32.f32 %v237
      %240 = vadd.xlane.f32.xlu0 %v238
      %v241 = vpop.xlane.xlu0 %240
      %242 = vadd.xlane.f32.xlu0 %v239
      %v243 = vpop.xlane.xlu0 %242
      %v244 = vcvt.f32.s32 %v241
      %v245 = vcvt.f32.s32 %v243
      %v246 = vshll.u32 %v245, 16
      %v247 = vadd.s32 %v246, %v244
      %v248 = vrot.slane %v247, 4
      %v249 = vadd.s32 %v247, %v248
      %v250 = vrot.slane %v249, 2
      %v251 = vadd.s32 %v249, %v250
      %v252 = vrot.slane %v251, 1
      %v253 = vadd.s32 %v251, %v252
      %s254 = vtos %v253
      %p255 = scmp.ge.s32.totalorder %s254, %s131
      %s256 = scalar_select %p255, %s144, %s232
      %s257 = scalar_select %p255, %s232, %s145
    $region22: #{tpu_custom_call.1} parent=1 // loop_footer
      %s137 = sadd.s32 1, %s133
    $region23: #{tpu_custom_call.1} parent=1 // loop_footer_branch
      %132 = sbr.rel target = $region19
    $region24: #{tpu_custom_call.1} parent=1 // loop_exit
      _
    %v258 = vstv %s139
    %vm259 = vcmp.le.s32.totalorder %v109, %v258
    %v260 = vsel %vm259, %v38, 0.0
    %261 = vmax.xlane.f32.xlu0 %v260
    %v262 = vpop.xlane.xlu0 %261
    %v263 = vrot.slane %v262, 4
    %v264 = vmax.f32 %v262, %v263
    %v265 = vrot.slane %v264, 2
    %v266 = vmax.f32 %v264, %v265
    %v267 = vrot.slane %v266, 1
    %v268 = vmax.f32 %v266, %v267
    %s269 = vtos %v268
    %v270 = vstv %s141
    %vm271 = vcmp.le.s32.totalorder %v109, %v270
    %v272 = vsel %vm271, %v38, 0.0
    %273 = vmax.xlane.f32.xlu0 %v272
    %v274 = vpop.xlane.xlu0 %273
    %v275 = vrot.slane %v274, 4
    %v276 = vmax.f32 %v274, %v275
    %v277 = vrot.slane %v276, 2
    %v278 = vmax.f32 %v276, %v277
    %v279 = vrot.slane %v278, 1
    %v280 = vmax.f32 %v278, %v279
    %s281 = vtos %v280
    %v282 = vstv %s143
    %vm283 = vcmp.le.s32.totalorder %v109, %v282
    %v284 = vsel %vm283, %v38, 0.0
    %285 = vmax.xlane.f32.xlu0 %v284
    %v286 = vpop.xlane.xlu0 %285
    %v287 = vrot.slane %v286, 4
    %v288 = vmax.f32 %v286, %v287
    %v289 = vrot.slane %v288, 2
    %v290 = vmax.f32 %v288, %v289
    %v291 = vrot.slane %v290, 1
    %v292 = vmax.f32 %v290, %v291
    %s293 = vtos %v292
    %v294 = vstv %s145
    %vm295 = vcmp.le.s32.totalorder %v109, %v294
    %v296 = vsel %vm295, %v38, 0.0
    %297 = vmax.xlane.f32.xlu0 %v296
    %v298 = vpop.xlane.xlu0 %297
    %v299 = vrot.slane %v298, 4
    %v300 = vmax.f32 %v298, %v299
    %v301 = vrot.slane %v300, 2
    %v302 = vmax.f32 %v300, %v301
    %v303 = vrot.slane %v302, 1
    %v304 = vmax.f32 %v302, %v303
    %s305 = vtos %v304
    %s306 = ssub.f32 %s281, %s269
    %s307 = smul.f32 %s115, %s306
    %s308 = sadd.f32 %s269, %s307
    %s309 = ssub.f32 %s305, %s293
    %s310 = smul.f32 %s127, %s309
    %s311 = sadd.f32 %s293, %s310
    %p312 = scmp.eq.s32.totalorder %s86, 0
    %p313 = scmp.ge.s32.totalorder %s107, 1
    %p314 = pnand %p312, %p313
    %p315 = pneg %p314
    %s316 = scalar_select %p315, %s308, -inf
    %s317 = scalar_select %p315, %s311, inf
    %v318 = vlaneseq
    %v319 = vand.u32 %v318, 127
    %vm320 = vcmp.eq.s32.totalorder %v319, 0
    %v321 = vstv %s316
    %v322 = vstv %s317
    %v323 = vsel %vm320, %v321, %v322
    %324 = vst [vmem:[#allocation7] sm:$0xff] %v323
    // Predicated region
    $region25: #{tpu_custom_call.1} parent=1 // pred_check
      _
    $region26: #{tpu_custom_call.1} parent=1 // pred_check_branch
      %326 = sbr.rel (0) target = $region28
    $region27: #{tpu_custom_call.1} parent=1 // pred_region
      %s328 = ssub.s32 128, 128
      %329 = vsyncadd [#allocation4], %s328
      %s331 = sshll.u32 [#allocation7], 4
      %s332 = int_to_ptr.vmem [resolvable:$true] %s331
      %334 = dma.vmem_to_hbm [thread:$0]  %s332, 128, %s2, [#allocation4]
    $region28: #{tpu_custom_call.1} parent=1 // pred_fallthru
      _
    // Predicated region
    $region29: #{tpu_custom_call.1} parent=1 // pred_check
      _
    $region30: #{tpu_custom_call.1} parent=1 // pred_check_branch
      %336 = sbr.rel (0) target = $region32
    $region31: #{tpu_custom_call.1} parent=1 // pred_region
      %337 = dma.done [#allocation4], 128
    $region32: #{tpu_custom_call.1} parent=1 // pred_fallthru
      _
    %338 = vsyncpa [#allocation3], 1
    %339 = vsyncpa [#allocation6], 1
    %340 = vsyncpa [#allocation4], 1

</llo_original>
